<compile_context>
chip_gen: v5e
topology: v5e:2x2
jax: 0.10.0
libtpu: 0.0.40
codegen_flags: <defaults>
</compile_context>

<pallas_src>
import jax
import jax.numpy as jnp
from jax.experimental import pallas as pl
from jax.experimental.pallas import tpu as pltpu

LN_EPS = 1e-5
TILE_N_DEFAULT = 2048  # batch rows per grid step (multiple of 8)


def _round_up(n, m):
    return ((n + m - 1) // m) * m


def _layernorm_no_affine(h):
    # h is f32; all LN math stays in f32 (VPU/EUP work is off the MXU critical path).
    mu = jnp.mean(h, axis=-1, keepdims=True)
    var = jnp.mean((h - mu) * (h - mu), axis=-1, keepdims=True)
    return (h - mu) * jax.lax.rsqrt(var + LN_EPS)


def encoder_kernel(x_ref, emb_ref, w0e_ref, w0c_ref, b0_ref,
                   w1_ref, b1_ref, wh_ref, bh_ref, out_ref):
    # x_ref:  (TILE_N, n_in)   streamed (input dtype, cast to bf16 at the dot)
    # emb_ref:(TILE_N, emb)    streamed
    # w*_ref: bf16 weights, b*_ref: f32 biases -- all VMEM-resident
    x = x_ref[...].astype(jnp.bfloat16)
    e = emb_ref[...].astype(jnp.bfloat16)

    # L0 (CondLayers: expr linear + bias-free cond linear) -> LN -> ReLU
    h = (jnp.dot(x, w0e_ref[...], preferred_element_type=jnp.float32)
         + jnp.dot(e, w0c_ref[...], preferred_element_type=jnp.float32)
         + b0_ref[...])
    h = jnp.maximum(_layernorm_no_affine(h), 0.0)

    # L1 -> LN -> ReLU   (dropout == identity in eval)
    h = (jnp.dot(h.astype(jnp.bfloat16), w1_ref[...],
                 preferred_element_type=jnp.float32) + b1_ref[...])
    h = jnp.maximum(_layernorm_no_affine(h), 0.0)

    # fused mean|log_var heads -> single lane-denser (TILE_N, 2*latent) store
    out_ref[...] = (jnp.dot(h.astype(jnp.bfloat16), wh_ref[...],
                            preferred_element_type=jnp.float32)
                    + bh_ref[...]).astype(out_ref.dtype)


def encoder_forward(x, batch_emb, params, *, tile_n=TILE_N_DEFAULT,
                    split_heads=True):
    """x: (N, n_in), batch_emb: (N, emb). Returns (means, log_vars) or fused (N, 2*latent)."""
    N, d_in = x.shape
    d_emb = batch_emb.shape[1]
    latent_dim = params["wm"].shape[1]

    # Resident parameters: weights cast to bf16 (tiny, one-time), biases stay f32.
    w0e = params["w0e"].astype(jnp.bfloat16)
    w0c = params["w0c"].astype(jnp.bfloat16)
    w1 = params["w1"].astype(jnp.bfloat16)
    wh = jnp.concatenate([params["wm"], params["wv"]], axis=1).astype(jnp.bfloat16)
    b0 = params["b0"].astype(jnp.float32)
    b1 = params["b1"].astype(jnp.float32)
    bh = jnp.concatenate([params["bm"], params["bv"]], axis=1).astype(jnp.float32)

    d_h0 = w0e.shape[1]
    d_h1 = w1.shape[1]
    d_head = wh.shape[1]

    # Tile selection: multiple of 8, capped so the grid has >=2 steps when N > 8
    # (lets the "parallel" batch axis shard across v7x's 2 TensorCores). No padding:
    # grid uses pl.cdiv and Mosaic masks the partial last block.
    n8 = _round_up(N, 8)
    half = _round_up(-(-n8 // 2), 8)
    tn = max(8, min(tile_n, n8, half))
    grid = (pl.cdiv(N, tn),)

    out = pl.pallas_call(
        encoder_kernel,
        out_shape=jax.ShapeDtypeStruct((N, d_head), jnp.float32),
        grid_spec=pltpu.PrefetchScalarGridSpec(
            num_scalar_prefetch=0,
            grid=grid,
            in_specs=[
                # streaming activations (two inputs -> no HBM concat pass)
                pl.BlockSpec((tn, d_in), lambda i: (i, 0)),
                pl.BlockSpec((tn, d_emb), lambda i: (i, 0)),
                # VMEM-resident parameters (constant index_map -> fetched once)
                pl.BlockSpec((d_in, d_h0), lambda i: (0, 0)),
                pl.BlockSpec((d_emb, d_h0), lambda i: (0, 0)),
                pl.BlockSpec((1, d_h0), lambda i: (0, 0)),
                pl.BlockSpec((d_h0, d_h1), lambda i: (0, 0)),
                pl.BlockSpec((1, d_h1), lambda i: (0, 0)),
                pl.BlockSpec((d_h1, d_head), lambda i: (0, 0)),
                pl.BlockSpec((1, d_head), lambda i: (0, 0)),
            ],
            out_specs=pl.BlockSpec((tn, d_head), lambda i: (i, 0)),
        ),
        compiler_params=pltpu.CompilerParams(
            dimension_semantics=("parallel",)),
    )(x, batch_emb, w0e, w0c, b0, w1, b1, wh, bh)

    if not split_heads:
        return out  # fused (N, 2*latent): cheapest if the caller can consume it
    return out[:, :latent_dim], out[:, latent_dim:]


def reference_forward(x, batch_emb, params):
    """Pure-JAX reference mirroring the PyTorch module (eval mode) with the same
    bf16-at-the-dot precision as the kernel (LN/ReLU in f32)."""
    bf = jnp.bfloat16
    h = (jnp.dot(x.astype(bf), params["w0e"].astype(bf),
                 preferred_element_type=jnp.float32)
         + jnp.dot(batch_emb.astype(bf), params["w0c"].astype(bf),
                   preferred_element_type=jnp.float32)
         + params["b0"])
    h = jnp.maximum(_layernorm_no_affine(h), 0.0)
    h = jnp.dot(h.astype(bf), params["w1"].astype(bf),
                preferred_element_type=jnp.float32) + params["b1"]
    h = jnp.maximum(_layernorm_no_affine(h), 0.0)
    means = jnp.dot(h.astype(bf), params["wm"].astype(bf),
                    preferred_element_type=jnp.float32) + params["bm"]
    log_vars = jnp.dot(h.astype(bf), params["wv"].astype(bf),
                       preferred_element_type=jnp.float32) + params["bv"]
    return means, log_vars


def init_params(key, n_in, emb_dim, layer_sizes, latent_dim):
    """Deterministic synthetic init. Weights stored as (in, out); biases as (1, out)."""
    ks = jax.random.split(key, 8)
    h0, h1 = layer_sizes[1], layer_sizes[2]

    def w(k, i, o):
        return jax.random.normal(k, (i, o), jnp.float32) * (1.0 / jnp.sqrt(i))

    return {
        "w0e": w(ks[0], n_in, h0),
        "w0c": w(ks[1], emb_dim, h0),
        "b0":  jax.random.normal(ks[2], (1, h0), jnp.float32) * 0.01,
        "w1":  w(ks[3], h0, h1),
        "b1":  jax.random.normal(ks[4], (1, h1), jnp.float32) * 0.01,
        "wm":  w(ks[5], h1, latent_dim),
        "bm":  jnp.zeros((1, latent_dim), jnp.float32),
        "wv":  w(ks[6], h1, latent_dim),
        "bv":  jnp.zeros((1, latent_dim), jnp.float32),
    }


if __name__ == "__main__":
    N = 8
    layer_sizes = [32, 64, 32]
    latent_dim = 16
    embedding_dim = 8

    key = jax.random.PRNGKey(0)
    kx, kb, kp = jax.random.split(key, 3)
    x = jax.random.normal(kx, (N, layer_sizes[0]), jnp.float32)
    batch_emb = jax.random.normal(kb, (N, embedding_dim), jnp.float32)
    params = init_params(kp, layer_sizes[0], embedding_dim, layer_sizes, latent_dim)

    means, log_vars = encoder_forward(x, batch_emb, params)
    jax.block_until_ready((means, log_vars))

    ref_means, ref_log_vars = reference_forward(x, batch_emb, params)
    assert means.shape == (N, latent_dim) and log_vars.shape == (N, latent_dim)
    # bf16 matmul operands -> tolerance relaxed from 1e-5 accordingly
    assert jnp.allclose(means, ref_means, atol=1e-2, rtol=1e-2)
    assert jnp.allclose(log_vars, ref_log_vars, atol=1e-2, rtol=1e-2)

    # also exercise a non-divisible, multi-tile batch path (masked partial block,
    # grid > 1, no wrapper padding)
    N2 = 37
    x2 = jax.random.normal(kx, (N2, layer_sizes[0]), jnp.float32)
    b2 = jax.random.normal(kb, (N2, embedding_dim), jnp.float32)
    m2, v2 = encoder_forward(x2, b2, params, tile_n=16)
    jax.block_until_ready((m2, v2))
    rm2, rv2 = reference_forward(x2, b2, params)
    assert m2.shape == (N2, latent_dim) and v2.shape == (N2, latent_dim)
    assert jnp.allclose(m2, rm2, atol=1e-2, rtol=1e-2)
    assert jnp.allclose(v2, rv2, atol=1e-2, rtol=1e-2)
    assert bool(jnp.all(jnp.isfinite(m2))) and bool(jnp.all(jnp.isfinite(v2)))

    # fused-output path (no wrapper-side head split)
    fused = encoder_forward(x, batch_emb, params, split_heads=False)
    jax.block_until_ready(fused)
    assert fused.shape == (N, 2 * latent_dim)

    print("KERNEL_OK")
</pallas_src>

<mosaic_0001>
module attributes {stable_mosaic.version = 11 : i64} {
  func.func @encoder_kernel(%arg0: i32, %arg1: memref<8x32xf32, #tpu.memory_space<vmem>>, %arg2: memref<8x8xf32, #tpu.memory_space<vmem>>, %arg3: memref<32x64xbf16, #tpu.memory_space<vmem>>, %arg4: memref<8x64xbf16, #tpu.memory_space<vmem>>, %arg5: memref<1x64xf32, #tpu.memory_space<vmem>>, %arg6: memref<64x32xbf16, #tpu.memory_space<vmem>>, %arg7: memref<1x32xf32, #tpu.memory_space<vmem>>, %arg8: memref<32x32xbf16, #tpu.memory_space<vmem>>, %arg9: memref<1x32xf32, #tpu.memory_space<vmem>>, %arg10: memref<8x32xf32, #tpu.memory_space<vmem>>) attributes {dimension_semantics = [#tpu.dimension_semantics<parallel>], iteration_bounds = array<i64: 1>, scalar_prefetch = 0 : i64, scratch_operands = 0 : i64, tpu.core_type = #tpu.core_type<tc>, window_params = [{transform_indices = @transform_0, window_bounds = array<i64: 8, 32>}, {transform_indices = @transform_1, window_bounds = array<i64: 8, 8>}, {pipeline_mode = #tpu.pipeline_mode<synchronous>, transform_indices = @transform_2, window_bounds = array<i64: 32, 64>}, {pipeline_mode = #tpu.pipeline_mode<synchronous>, transform_indices = @transform_3, window_bounds = array<i64: 8, 64>}, {pipeline_mode = #tpu.pipeline_mode<synchronous>, transform_indices = @transform_4, window_bounds = array<i64: 1, 64>}, {pipeline_mode = #tpu.pipeline_mode<synchronous>, transform_indices = @transform_5, window_bounds = array<i64: 64, 32>}, {pipeline_mode = #tpu.pipeline_mode<synchronous>, transform_indices = @transform_6, window_bounds = array<i64: 1, 32>}, {pipeline_mode = #tpu.pipeline_mode<synchronous>, transform_indices = @transform_7, window_bounds = array<i64: 32, 32>}, {pipeline_mode = #tpu.pipeline_mode<synchronous>, transform_indices = @transform_8, window_bounds = array<i64: 1, 32>}, {transform_indices = @transform_9, window_bounds = array<i64: 8, 32>}]} {
    %c0 = arith.constant 0 : index
    %c0_0 = arith.constant 0 : index
    %0 = vector.load %arg1[%c0, %c0_0] : memref<8x32xf32, #tpu.memory_space<vmem>>, vector<8x32xf32>
    %1 = arith.truncf %0 : vector<8x32xf32> to vector<8x32xbf16>
    %c0_1 = arith.constant 0 : index
    %c0_2 = arith.constant 0 : index
    %2 = vector.load %arg2[%c0_1, %c0_2] : memref<8x8xf32, #tpu.memory_space<vmem>>, vector<8x8xf32>
    %3 = arith.truncf %2 : vector<8x8xf32> to vector<8x8xbf16>
    %c0_3 = arith.constant 0 : index
    %c0_4 = arith.constant 0 : index
    %4 = vector.load %arg3[%c0_3, %c0_4] : memref<32x64xbf16, #tpu.memory_space<vmem>>, vector<32x64xbf16>
    %cst = arith.constant dense<0.000000e+00> : vector<8x64xf32>
    %5 = tpu.matmul %1, %4, %cst {dimension_numbers = #tpu.dot_dimension_numbers<[1], [0], [0], [1], [0, 0, 1, 1], [], []>} : vector<8x32xbf16>, vector<32x64xbf16>, vector<8x64xf32> -> vector<8x64xf32>
    %c0_5 = arith.constant 0 : index
    %c0_6 = arith.constant 0 : index
    %6 = vector.load %arg4[%c0_5, %c0_6] : memref<8x64xbf16, #tpu.memory_space<vmem>>, vector<8x64xbf16>
    %cst_7 = arith.constant dense<0.000000e+00> : vector<8x64xf32>
    %7 = tpu.matmul %3, %6, %cst_7 {dimension_numbers = #tpu.dot_dimension_numbers<[1], [0], [0], [1], [0, 0, 1, 1], [], []>} : vector<8x8xbf16>, vector<8x64xbf16>, vector<8x64xf32> -> vector<8x64xf32>
    %8 = arith.addf %5, %7 : vector<8x64xf32>
    %c0_8 = arith.constant 0 : index
    %c0_9 = arith.constant 0 : index
    %9 = vector.load %arg5[%c0_8, %c0_9] : memref<1x64xf32, #tpu.memory_space<vmem>>, vector<1x64xf32>
    %10 = vector.broadcast %9 : vector<1x64xf32> to vector<8x64xf32>
    %11 = arith.addf %8, %10 : vector<8x64xf32>
    %cst_10 = arith.constant dense<0.000000e+00> : vector<8xf32>
    %12 = vector.multi_reduction <add>, %11, %cst_10 [1] : vector<8x64xf32> to vector<8xf32>
    %13 = vector.shape_cast %12 : vector<8xf32> to vector<8x1xf32>
    %cst_11 = arith.constant 6.400000e+01 : f32
    %14 = vector.broadcast %cst_11 : f32 to vector<8x1xf32>
    %15 = arith.divf %13, %14 : vector<8x1xf32>
    %16 = vector.broadcast %15 : vector<8x1xf32> to vector<8x64xf32>
    %17 = arith.subf %11, %16 : vector<8x64xf32>
    %18 = vector.broadcast %15 : vector<8x1xf32> to vector<8x64xf32>
    %19 = arith.subf %11, %18 : vector<8x64xf32>
    %20 = arith.mulf %17, %19 : vector<8x64xf32>
    %cst_12 = arith.constant dense<0.000000e+00> : vector<8xf32>
    %21 = vector.multi_reduction <add>, %20, %cst_12 [1] : vector<8x64xf32> to vector<8xf32>
    %22 = vector.shape_cast %21 : vector<8xf32> to vector<8x1xf32>
    %cst_13 = arith.constant 6.400000e+01 : f32
    %23 = vector.broadcast %cst_13 : f32 to vector<8x1xf32>
    %24 = arith.divf %22, %23 : vector<8x1xf32>
    %25 = vector.broadcast %15 : vector<8x1xf32> to vector<8x64xf32>
    %26 = arith.subf %11, %25 : vector<8x64xf32>
    %cst_14 = arith.constant 9.99999974E-6 : f32
    %27 = vector.broadcast %cst_14 : f32 to vector<8x1xf32>
    %28 = arith.addf %24, %27 : vector<8x1xf32>
    %29 = math.rsqrt %28 : vector<8x1xf32>
    %30 = vector.broadcast %29 : vector<8x1xf32> to vector<8x64xf32>
    %31 = arith.mulf %26, %30 : vector<8x64xf32>
    %cst_15 = arith.constant 0.000000e+00 : f32
    %32 = vector.broadcast %cst_15 : f32 to vector<8x64xf32>
    %33 = arith.maximumf %31, %32 : vector<8x64xf32>
    %34 = arith.truncf %33 : vector<8x64xf32> to vector<8x64xbf16>
    %c0_16 = arith.constant 0 : index
    %c0_17 = arith.constant 0 : index
    %35 = vector.load %arg6[%c0_16, %c0_17] : memref<64x32xbf16, #tpu.memory_space<vmem>>, vector<64x32xbf16>
    %cst_18 = arith.constant dense<0.000000e+00> : vector<8x32xf32>
    %36 = tpu.matmul %34, %35, %cst_18 {dimension_numbers = #tpu.dot_dimension_numbers<[1], [0], [0], [1], [0, 0, 1, 1], [], []>} : vector<8x64xbf16>, vector<64x32xbf16>, vector<8x32xf32> -> vector<8x32xf32>
    %c0_19 = arith.constant 0 : index
    %c0_20 = arith.constant 0 : index
    %37 = vector.load %arg7[%c0_19, %c0_20] : memref<1x32xf32, #tpu.memory_space<vmem>>, vector<1x32xf32>
    %38 = vector.broadcast %37 : vector<1x32xf32> to vector<8x32xf32>
    %39 = arith.addf %36, %38 : vector<8x32xf32>
    %cst_21 = arith.constant dense<0.000000e+00> : vector<8xf32>
    %40 = vector.multi_reduction <add>, %39, %cst_21 [1] : vector<8x32xf32> to vector<8xf32>
    %41 = vector.shape_cast %40 : vector<8xf32> to vector<8x1xf32>
    %cst_22 = arith.constant 3.200000e+01 : f32
    %42 = vector.broadcast %cst_22 : f32 to vector<8x1xf32>
    %43 = arith.divf %41, %42 : vector<8x1xf32>
    %44 = vector.broadcast %43 : vector<8x1xf32> to vector<8x32xf32>
    %45 = arith.subf %39, %44 : vector<8x32xf32>
    %46 = vector.broadcast %43 : vector<8x1xf32> to vector<8x32xf32>
    %47 = arith.subf %39, %46 : vector<8x32xf32>
    %48 = arith.mulf %45, %47 : vector<8x32xf32>
    %cst_23 = arith.constant dense<0.000000e+00> : vector<8xf32>
    %49 = vector.multi_reduction <add>, %48, %cst_23 [1] : vector<8x32xf32> to vector<8xf32>
    %50 = vector.shape_cast %49 : vector<8xf32> to vector<8x1xf32>
    %cst_24 = arith.constant 3.200000e+01 : f32
    %51 = vector.broadcast %cst_24 : f32 to vector<8x1xf32>
    %52 = arith.divf %50, %51 : vector<8x1xf32>
    %53 = vector.broadcast %43 : vector<8x1xf32> to vector<8x32xf32>
    %54 = arith.subf %39, %53 : vector<8x32xf32>
    %cst_25 = arith.constant 9.99999974E-6 : f32
    %55 = vector.broadcast %cst_25 : f32 to vector<8x1xf32>
    %56 = arith.addf %52, %55 : vector<8x1xf32>
    %57 = math.rsqrt %56 : vector<8x1xf32>
    %58 = vector.broadcast %57 : vector<8x1xf32> to vector<8x32xf32>
    %59 = arith.mulf %54, %58 : vector<8x32xf32>
    %cst_26 = arith.constant 0.000000e+00 : f32
    %60 = vector.broadcast %cst_26 : f32 to vector<8x32xf32>
    %61 = arith.maximumf %59, %60 : vector<8x32xf32>
    %62 = arith.truncf %61 : vector<8x32xf32> to vector<8x32xbf16>
    %c0_27 = arith.constant 0 : index
    %c0_28 = arith.constant 0 : index
    %63 = vector.load %arg8[%c0_27, %c0_28] : memref<32x32xbf16, #tpu.memory_space<vmem>>, vector<32x32xbf16>
    %cst_29 = arith.constant dense<0.000000e+00> : vector<8x32xf32>
    %64 = tpu.matmul %62, %63, %cst_29 {dimension_numbers = #tpu.dot_dimension_numbers<[1], [0], [0], [1], [0, 0, 1, 1], [], []>} : vector<8x32xbf16>, vector<32x32xbf16>, vector<8x32xf32> -> vector<8x32xf32>
    %c0_30 = arith.constant 0 : index
    %c0_31 = arith.constant 0 : index
    %65 = vector.load %arg9[%c0_30, %c0_31] : memref<1x32xf32, #tpu.memory_space<vmem>>, vector<1x32xf32>
    %66 = vector.broadcast %65 : vector<1x32xf32> to vector<8x32xf32>
    %67 = arith.addf %64, %66 : vector<8x32xf32>
    %c0_32 = arith.constant 0 : index
    %c0_33 = arith.constant 0 : index
    %68 = vector.load %arg10[%c0_32, %c0_33] : memref<8x32xf32, #tpu.memory_space<vmem>>, vector<8x32xf32>
    tpu.vector_store %arg10[%c0_32, %c0_33], %67 {strides = array<i32>} : memref<8x32xf32, #tpu.memory_space<vmem>>, vector<8x32xf32>,
    return
  }
  func.func @transform_0(%arg0: i32) -> (i32, i32) {
    %c0_i32 = arith.constant 0 : i32
    %c0_i32_0 = arith.constant 0 : i32
    return %arg0, %c0_i32 : i32, i32
  }
  func.func @transform_1(%arg0: i32) -> (i32, i32) {
    %c0_i32 = arith.constant 0 : i32
    %c0_i32_0 = arith.constant 0 : i32
    return %arg0, %c0_i32 : i32, i32
  }
  func.func @transform_2(%arg0: i32) -> (i32, i32) {
    %c0_i32 = arith.constant 0 : i32
    %c0_i32_0 = arith.constant 0 : i32
    %c0_i32_1 = arith.constant 0 : i32
    return %c0_i32, %c0_i32_0 : i32, i32
  }
  func.func @transform_3(%arg0: i32) -> (i32, i32) {
    %c0_i32 = arith.constant 0 : i32
    %c0_i32_0 = arith.constant 0 : i32
    %c0_i32_1 = arith.constant 0 : i32
    return %c0_i32, %c0_i32_0 : i32, i32
  }
  func.func @transform_4(%arg0: i32) -> (i32, i32) {
    %c0_i32 = arith.constant 0 : i32
    %c0_i32_0 = arith.constant 0 : i32
    %c0_i32_1 = arith.constant 0 : i32
    return %c0_i32, %c0_i32_0 : i32, i32
  }
  func.func @transform_5(%arg0: i32) -> (i32, i32) {
    %c0_i32 = arith.constant 0 : i32
    %c0_i32_0 = arith.constant 0 : i32
    %c0_i32_1 = arith.constant 0 : i32
    return %c0_i32, %c0_i32_0 : i32, i32
  }
  func.func @transform_6(%arg0: i32) -> (i32, i32) {
    %c0_i32 = arith.constant 0 : i32
    %c0_i32_0 = arith.constant 0 : i32
    %c0_i32_1 = arith.constant 0 : i32
    return %c0_i32, %c0_i32_0 : i32, i32
  }
  func.func @transform_7(%arg0: i32) -> (i32, i32) {
    %c0_i32 = arith.constant 0 : i32
    %c0_i32_0 = arith.constant 0 : i32
    %c0_i32_1 = arith.constant 0 : i32
    return %c0_i32, %c0_i32_0 : i32, i32
  }
  func.func @transform_8(%arg0: i32) -> (i32, i32) {
    %c0_i32 = arith.constant 0 : i32
    %c0_i32_0 = arith.constant 0 : i32
    %c0_i32_1 = arith.constant 0 : i32
    return %c0_i32, %c0_i32_0 : i32, i32
  }
  func.func @transform_9(%arg0: i32) -> (i32, i32) {
    %c0_i32 = arith.constant 0 : i32
    %c0_i32_0 = arith.constant 0 : i32
    return %arg0, %c0_i32 : i32, i32
  }
}

</mosaic_0001>

<llo_original>
// kernel: tpu_custom_call.1
$region0: #{tpu_custom_call.1}
  #allocation0 [shape = 'u32[]', space=smem, size = 0x4, offset = 0x4, fixed_abs, tag = 'smem constant byte address 0x4 - core index']
  #allocation1 [shape = 'u32[72,128]{1,0:T(1,128)}', space=vmem, size = 0x9000, scoped, tag = 'internal scratch']
  %s0 = inlined_call_operand.vmem [shape: f32[8,32], index: 0, kind: input, shape index: {}]
  %s1 = inlined_call_operand.vmem [shape: f32[8,8], index: 1, kind: input, shape index: {}]
  %s2 = inlined_call_operand.vmem [shape: bf16[32,64], index: 2, kind: input, shape index: {}]
  %s3 = inlined_call_operand.hbm [shape: bf16[8,64], index: 3, kind: input, shape index: {}]
  %s4 = inlined_call_operand.vmem [shape: f32[1,64], index: 4, kind: input, shape index: {}]
  %s5 = inlined_call_operand.vmem [shape: bf16[64,32], index: 5, kind: input, shape index: {}]
  %s6 = inlined_call_operand.vmem [shape: f32[1,32], index: 6, kind: input, shape index: {}]
  %s7 = inlined_call_operand.vmem [shape: bf16[32,32], index: 7, kind: input, shape index: {}]
  %s8 = inlined_call_operand.vmem [shape: f32[1,32], index: 8, kind: input, shape index: {}]
  %s9 = inlined_call_operand.hbm [shape: f32[8,32], index: 9, kind: output, shape index: {}]
  %s10 = sld [smem:[#allocation0]]
  $region50: #{tpu_custom_call.1} parent=0
    _
  %s12 = ssub.s32 1, %s10
  %s13 = scalar_select 0, %s12, %s10
  $region1: #{tpu_custom_call.1} parent=0
    #allocation2 [shape = 'u8[2048]{0}', space=vmem, size = 0x800, scoped, tag = 'input window, operand 3, single buffered']
    #allocation3 [shape = 's32[1]{0}', space=sflag, size = 0x4, scoped, tag = 'scoped memory for tpu_custom_call.1']
    #allocation4 [shape = 's32[1]{0}', space=sflag, size = 0x4, scoped, tag = 'scoped memory for tpu_custom_call.1']
    #allocation5 [shape = 'u8[4096]{0}', space=vmem, size = 0x1000, scoped, tag = 'output window, operand 0, single buffered']
    %14 = vsyncpa [#allocation3], 0
    %15 = vsyncpa [#allocation4], 0
    // Predicated region
    $region2: #{tpu_custom_call.1} parent=1 // pred_check
      _
    $region3: #{tpu_custom_call.1} parent=1 // pred_check_branch
      %17 = sbr.rel (0) target = $region5
    $region4: #{tpu_custom_call.1} parent=1 // pred_region
      _
    $region5: #{tpu_custom_call.1} parent=1 // pred_fallthru
      _
    // Predicated region
    $region6: #{tpu_custom_call.1} parent=1 // pred_check
      _
    $region7: #{tpu_custom_call.1} parent=1 // pred_check_branch
      %19 = sbr.rel (0) target = $region9
    $region8: #{tpu_custom_call.1} parent=1 // pred_region
      _
    $region9: #{tpu_custom_call.1} parent=1 // pred_fallthru
      _
    // Predicated region
    $region10: #{tpu_custom_call.1} parent=1 // pred_check
      _
    $region11: #{tpu_custom_call.1} parent=1 // pred_check_branch
      %21 = sbr.rel (0) target = $region13
    $region12: #{tpu_custom_call.1} parent=1 // pred_region
      _
    $region13: #{tpu_custom_call.1} parent=1 // pred_fallthru
      _
    // Predicated region
    $region14: #{tpu_custom_call.1} parent=1 // pred_check
      _
    $region15: #{tpu_custom_call.1} parent=1 // pred_check_branch
      %23 = sbr.rel (0) target = $region17
    $region16: #{tpu_custom_call.1} parent=1 // pred_region
      %25 = vsyncadd [#allocation3], 0
      %s27 = sshll.u32 %s3, 4
      %s28 = int_to_ptr.hbm [resolvable:$true] %s27
      %s29 = sshll.u32 [#allocation2], 4
      %s30 = int_to_ptr.vmem [resolvable:$true] %s29
      %32 = dma.hbm_to_vmem [thread:$0]  %s28, 64, %s30, [#allocation3]
    $region17: #{tpu_custom_call.1} parent=1 // pred_fallthru
      _
    // Predicated region
    $region18: #{tpu_custom_call.1} parent=1 // pred_check
      _
    $region19: #{tpu_custom_call.1} parent=1 // pred_check_branch
      %34 = sbr.rel (0) target = $region21
    $region20: #{tpu_custom_call.1} parent=1 // pred_region
      _
    $region21: #{tpu_custom_call.1} parent=1 // pred_fallthru
      _
    // Predicated region
    $region22: #{tpu_custom_call.1} parent=1 // pred_check
      _
    $region23: #{tpu_custom_call.1} parent=1 // pred_check_branch
      %36 = sbr.rel (0) target = $region25
    $region24: #{tpu_custom_call.1} parent=1 // pred_region
      _
    $region25: #{tpu_custom_call.1} parent=1 // pred_fallthru
      _
    // Predicated region
    $region26: #{tpu_custom_call.1} parent=1 // pred_check
      _
    $region27: #{tpu_custom_call.1} parent=1 // pred_check_branch
      %38 = sbr.rel (0) target = $region29
    $region28: #{tpu_custom_call.1} parent=1 // pred_region
      _
    $region29: #{tpu_custom_call.1} parent=1 // pred_fallthru
      _
    // Predicated region
    $region30: #{tpu_custom_call.1} parent=1 // pred_check
      _
    $region31: #{tpu_custom_call.1} parent=1 // pred_check_branch
      %40 = sbr.rel (0) target = $region33
    $region32: #{tpu_custom_call.1} parent=1 // pred_region
      _
    $region33: #{tpu_custom_call.1} parent=1 // pred_fallthru
      _
    // Predicated region
    $region34: #{tpu_custom_call.1} parent=1 // pred_check
      _
    $region35: #{tpu_custom_call.1} parent=1 // pred_check_branch
      %42 = sbr.rel (0) target = $region37
    $region36: #{tpu_custom_call.1} parent=1 // pred_region
      _
    $region37: #{tpu_custom_call.1} parent=1 // pred_fallthru
      _
    // Predicated region
    $region38: #{tpu_custom_call.1} parent=1 // pred_check
      _
    $region39: #{tpu_custom_call.1} parent=1 // pred_check_branch
      %44 = sbr.rel (0) target = $region41
    $region40: #{tpu_custom_call.1} parent=1 // pred_region
      %46 = dma.done [#allocation3], 64
    $region41: #{tpu_custom_call.1} parent=1 // pred_fallthru
      _
    %v48 = vld [vmem:[%s0] sm:$0xff]
    %v49 = vpack.c.bf16 %v48, %v48
    %v50 = vld [vmem:[%s1] sm:$0xff]
    %v51 = vpack.c.bf16 %v50, %v50
    %v52 = vld [vmem:[%s2] sm:$0xf]
    %v53 = vld [vmem:[%s2 + $0x4] sm:$0xf]
    %v54 = vld [vmem:[%s2 + $0x8] sm:$0xf]
    %v55 = vld [vmem:[%s2 + $0xc] sm:$0xf]
    %v56 = vld [vmem:[#allocation2] sm:$0xf]
    %vm57 = vcmask 64512
    %v59 = vsel %vm57, %v51, 0
    %vm61 = vcmask 1043456
    %v63 = vsel %vm61, %v56, 0
    %65 = vmatpush.bf16.msra.mxu0 0
    %66 = vmatpush.bf16.msra.mxu0 0
    %67 = vmatpush.bf16.msra.mxu0 0
    %68 = vmatpush.bf16.msra.mxu0 0
    %69 = vmatpush.bf16.msra.mxu0 0
    %70 = vmatpush.bf16.msra.mxu0 0
    %71 = vmatpush.bf16.msra.mxu0 0
    %72 = vmatpush.bf16.msra.mxu0 %v63
    %73 = vmatmul.bf16.gmra.mxu0 %v59
    %v74 = vpop.f32.mrf.mxu0
    %v75 = vadd.f32 0.0, %v74
    %v76 = vpop.f32.mrf.mxu0
    %77 = vdwg.mxu0
    %v82 = vunpack.c.l.b16 %v52
    %v83 = vunpack.c.l.b16 %v53
    %v84 = vunpack.c.l.b16 %v54
    %v85 = vunpack.c.l.b16 %v55
    %v86 = vpack.c.b16 %v83, %v82
    %v87 = vpack.c.b16 %v85, %v84
    %vm90 = vcmask 261120
    %v92 = vsel %vm90, %v49, 0
    %94 = vmatpush.bf16.msra.mxu0 0
    %95 = vmatpush.bf16.msra.mxu0 0
    %96 = vmatpush.bf16.msra.mxu0 0
    %97 = vmatpush.bf16.msra.mxu0 0
    %98 = vmatpush.bf16.msra.mxu0 0
    %99 = vmatpush.bf16.msra.mxu0 0
    %100 = vmatpush.bf16.msra.mxu0 %v87
    %101 = vmatpush.bf16.msra.mxu0 %v86
    %102 = vmatmul.bf16.gmra.mxu0 %v92
    %v103 = vpop.f32.mrf.mxu0
    %v104 = vadd.f32 %v75, %v103
    %v105 = vpop.f32.mrf.mxu0
    %106 = vdwg.mxu0
    %v107 = vld [vmem:[%s4] sm:$0x1]
    %v109 = vperm.slane %v107, 0
    %v111 = vadd.f32 %v104, %v109
    %vm112 = vcmask 523264
    %v113 = vsel %vm112, %v111, 0.0
    %114 = vadd.xlane.f32.xlu0 %v113
    %v115 = vpop.xlane.xlu0 %114
    %v116 = vrcp.pop 64.0
    %v117 = vmul.f32 64.0, %v116
    %v118 = vsub.f32 1.0, %v117
    %v119 = vmul.f32 %v116, %v118
    %v120 = vadd.f32 %v116, %v119
    %vm121 = vweird.f32 %v116
    %v122 = vsel %vm121, %v116, %v120
    %v123 = vmul.f32 %v115, %v122
    %v124 = vsub.f32 %v111, %v123
    %v125 = vmul.f32 %v124, %v124
    %v126 = vsel %vm112, %v125, 0.0
    %127 = vadd.xlane.f32.xlu0 %v126
    %v128 = vpop.xlane.xlu0 %127
    %v129 = vmul.f32 %v128, %v122
    %v130 = vadd.f32 %v129, 1e-05
    %v131 = vrsqrt.pop %v130
    %v132 = vmul.f32 %v131, %v130
    %v133 = vmul.f32 %v132, %v131
    %v134 = vmul.f32 0.5, %v133
    %v135 = vsub.f32 1.5, %v134
    %v136 = vmul.f32 %v131, %v135
    %vm137 = vweird.f32 %v130
    %vm138 = vweird.f32 %v131
    %vm139 = vmor %vm137, %vm138
    %v140 = vsel %vm139, %v131, %v136
    %v141 = vmul.f32 %v124, %v140
    %v142 = vmax.f32 %v141, 0.0
    %v143 = vpack.c.bf16 %v142, %v142
    %v144 = vld [vmem:[%s5] sm:$0xf]
    %v145 = vld [vmem:[%s5 + $0x4] sm:$0xf]
    %v146 = vld [vmem:[%s5 + $0x8] sm:$0xf]
    %v147 = vld [vmem:[%s5 + $0xc] sm:$0xf]
    %v148 = vld [vmem:[%s5 + $0x10] sm:$0xf]
    %v149 = vld [vmem:[%s5 + $0x14] sm:$0xf]
    %v150 = vld [vmem:[%s5 + $0x18] sm:$0xf]
    %v151 = vld [vmem:[%s5 + $0x1c] sm:$0xf]
    %v152 = vld [vmem:[%s6] sm:$0x1]
    %v154 = vperm.slane %v152, 0
    %v164 = vunpack.c.l.b16 %v144
    %v165 = vunpack.c.l.b16 %v145
    %v166 = vunpack.c.l.b16 %v146
    %v167 = vunpack.c.l.b16 %v147
    %v168 = vunpack.c.l.b16 %v148
    %v169 = vunpack.c.l.b16 %v149
    %v170 = vunpack.c.l.b16 %v150
    %v171 = vunpack.c.l.b16 %v151
    %v172 = vpack.c.b16 %v165, %v164
    %v173 = vpack.c.b16 %v167, %v166
    %v174 = vpack.c.b16 %v169, %v168
    %v175 = vpack.c.b16 %v171, %v170
    %v181 = vsel %vm112, %v143, 0
    %183 = vmatpush.bf16.msra.mxu0 0
    %184 = vmatpush.bf16.msra.mxu0 0
    %185 = vmatpush.bf16.msra.mxu0 0
    %186 = vmatpush.bf16.msra.mxu0 0
    %187 = vmatpush.bf16.msra.mxu0 %v175
    %188 = vmatpush.bf16.msra.mxu0 %v174
    %189 = vmatpush.bf16.msra.mxu0 %v173
    %190 = vmatpush.bf16.msra.mxu0 %v172
    %191 = vmatmul.bf16.gmra.mxu0 %v181
    %v192 = vpop.f32.mrf.mxu0
    %v193 = vadd.f32 %v154, %v192
    %v194 = vpop.f32.mrf.mxu0
    %195 = vdwg.mxu0
    %v196 = vsel %vm90, %v193, 0.0
    %197 = vadd.xlane.f32.xlu0 %v196
    %v198 = vpop.xlane.xlu0 %197
    %v199 = vrcp.pop 32.0
    %v200 = vmul.f32 32.0, %v199
    %v201 = vsub.f32 1.0, %v200
    %v202 = vmul.f32 %v199, %v201
    %v203 = vadd.f32 %v199, %v202
    %vm204 = vweird.f32 %v199
    %v205 = vsel %vm204, %v199, %v203
    %v206 = vmul.f32 %v198, %v205
    %v207 = vsub.f32 %v193, %v206
    %v208 = vmul.f32 %v207, %v207
    %v209 = vsel %vm90, %v208, 0.0
    %210 = vadd.xlane.f32.xlu0 %v209
    %v211 = vpop.xlane.xlu0 %210
    %v212 = vmul.f32 %v211, %v205
    %v213 = vadd.f32 %v212, 1e-05
    %v214 = vrsqrt.pop %v213
    %v215 = vmul.f32 %v214, %v213
    %v216 = vmul.f32 %v215, %v214
    %v217 = vmul.f32 0.5, %v216
    %v218 = vsub.f32 1.5, %v217
    %v219 = vmul.f32 %v214, %v218
    %vm220 = vweird.f32 %v213
    %vm221 = vweird.f32 %v214
    %vm222 = vmor %vm220, %vm221
    %v223 = vsel %vm222, %v214, %v219
    %v224 = vmul.f32 %v207, %v223
    %v225 = vmax.f32 %v224, 0.0
    %v226 = vpack.c.bf16 %v225, %v225
    %v227 = vld [vmem:[%s7] sm:$0xf]
    %v228 = vld [vmem:[%s7 + $0x4] sm:$0xf]
    %v229 = vld [vmem:[%s7 + $0x8] sm:$0xf]
    %v230 = vld [vmem:[%s7 + $0xc] sm:$0xf]
    %v231 = vld [vmem:[%s8] sm:$0x1]
    %v233 = vperm.slane %v231, 0
    %v239 = vunpack.c.l.b16 %v227
    %v240 = vunpack.c.l.b16 %v228
    %v241 = vunpack.c.l.b16 %v229
    %v242 = vunpack.c.l.b16 %v230
    %v243 = vpack.c.b16 %v240, %v239
    %v244 = vpack.c.b16 %v242, %v241
    %v248 = vsel %vm90, %v226, 0
    %250 = vmatpush.bf16.msra.mxu0 0
    %251 = vmatpush.bf16.msra.mxu0 0
    %252 = vmatpush.bf16.msra.mxu0 0
    %253 = vmatpush.bf16.msra.mxu0 0
    %254 = vmatpush.bf16.msra.mxu0 0
    %255 = vmatpush.bf16.msra.mxu0 0
    %256 = vmatpush.bf16.msra.mxu0 %v244
    %257 = vmatpush.bf16.msra.mxu0 %v243
    %258 = vmatmul.bf16.gmra.mxu0 %v248
    %v259 = vpop.f32.mrf.mxu0
    %v260 = vadd.f32 %v233, %v259
    %v261 = vpop.f32.mrf.mxu0
    %262 = vdwg.mxu0
    %263 = vst.msk [vmem:[#allocation5] sm:$0xff] %vm90, %v260
    // Predicated region
    $region42: #{tpu_custom_call.1} parent=1 // pred_check
      _
    $region43: #{tpu_custom_call.1} parent=1 // pred_check_branch
      %265 = sbr.rel (0) target = $region45
    $region44: #{tpu_custom_call.1} parent=1 // pred_region
      %267 = vsyncadd [#allocation4], 0
      %s269 = sshll.u32 [#allocation5], 4
      %s270 = int_to_ptr.vmem [resolvable:$true] %s269
      %s271 = sshll.u32 %s9, 4
      %s272 = int_to_ptr.hbm [resolvable:$true] %s271
      %274 = dma.vmem_to_hbm [thread:$0]  %s270, 128, %s272, [#allocation4]
    $region45: #{tpu_custom_call.1} parent=1 // pred_fallthru
      _
    // Predicated region
    $region46: #{tpu_custom_call.1} parent=1 // pred_check
      _
    $region47: #{tpu_custom_call.1} parent=1 // pred_check_branch
      %276 = sbr.rel (0) target = $region49
    $region48: #{tpu_custom_call.1} parent=1 // pred_region
      %278 = dma.done [#allocation4], 128
    $region49: #{tpu_custom_call.1} parent=1 // pred_fallthru
      _
    %279 = vsyncpa [#allocation3], 1
    %280 = vsyncpa [#allocation4], 1

</llo_original>
